<compile_context>
chip_gen: v7x
topology: tpu7x:2x2x1
jax: 0.10.0
libtpu: 0.0.40
codegen_flags: <defaults>
</compile_context>

<pallas_src>
import math
import functools

import jax
import jax.numpy as jnp
from jax import lax
from jax.experimental import pallas as pl
from jax.experimental.pallas import tpu as pltpu

ENCODER_NUM = 1024  # fixed by the module (self.encoder_num = 1024)
LANE = 128


def _pick_block(dim, candidates):
    for c in candidates:
        if dim % c == 0:
            return c
    return dim


# ----------------------- tiled linear (fc / classifier) ----------------------
def _linear_kernel(x_ref, w_ref, b_ref, o_ref, *, scale):
    y = jnp.dot(x_ref[...].astype(jnp.bfloat16), w_ref[...],
                preferred_element_type=jnp.float32)
    y = y + b_ref[...]
    if scale != 1.0:
        y = y * scale
    o_ref[...] = y.astype(o_ref.dtype)


def linear(x, w, b, scale=1.0):
    """y = (x @ w + b) * scale.  x:(M,K) f32, w:(K,N) bf16, b:(N,) f32."""
    M, K = x.shape
    N = w.shape[1]
    bm = _pick_block(M, (256, 128, 64, 32, 16, 8))
    bn = _pick_block(N, (512, 256, 128))
    return pl.pallas_call(
        functools.partial(_linear_kernel, scale=float(scale)),
        out_shape=jax.ShapeDtypeStruct((M, N), jnp.float32),
        grid=(M // bm, N // bn),
        in_specs=[pl.BlockSpec((bm, K), lambda i, j: (i, 0)),
                  pl.BlockSpec((K, bn), lambda i, j: (0, j)),
                  pl.BlockSpec((1, bn), lambda i, j: (0, j))],
        out_specs=pl.BlockSpec((bm, bn), lambda i, j: (i, j)),
        compiler_params=pltpu.CompilerParams(
            dimension_semantics=("parallel", "parallel")),
    )(x, w, b.reshape(1, N))


# -------------------- fused self-attention block kernel ----------------------
def _attn_block_kernel(x_ref, in_w_ref, in_b_ref, out_w_ref, out_b_ref,
                       g_ref, beta_ref, o_ref, *, nhead, scale, eps):
    S = x_ref.shape[1]
    D = x_ref.shape[2]
    Dh = D // nhead
    x = x_ref[0]                                   # (S, D) f32, one sequence

    # fused QKV projection (bf16 MXU, f32 accumulation)
    qkv = jnp.dot(x.astype(jnp.bfloat16), in_w_ref[...],
                  preferred_element_type=jnp.float32) + in_b_ref[...]

    def heads(t):  # (S, D) bf16 -> (H, S, Dh) via static 128-lane slices
        return jnp.stack([t[:, h * Dh:(h + 1) * Dh] for h in range(nhead)],
                         axis=0)

    qh = heads(qkv[:, :D].astype(jnp.bfloat16))
    kh = heads(qkv[:, D:2 * D].astype(jnp.bfloat16))
    vh = heads(qkv[:, 2 * D:].astype(jnp.bfloat16))

    # scaled dot-product attention, all heads batched in one grid step
    s = jnp.einsum('hqd,hkd->hqk', qh, kh,
                   preferred_element_type=jnp.float32) * scale
    # causal mask generated in-kernel (0 on/below diagonal, -inf above)
    qi = lax.broadcasted_iota(jnp.int32, (S, S), 0)
    kj = lax.broadcasted_iota(jnp.int32, (S, S), 1)
    s = jnp.where((kj <= qi)[None, :, :], s, -jnp.inf)
    m = jnp.max(s, axis=-1, keepdims=True)
    p = jnp.exp(s - m)
    p = p * pl.reciprocal(jnp.sum(p, axis=-1, keepdims=True), approx=True)
    o = jnp.einsum('hqk,hkd->hqd', p.astype(jnp.bfloat16), vh,
                   preferred_element_type=jnp.float32)     # (H, S, Dh)

    # merge heads back along lanes and apply output projection
    attn = jnp.concatenate([o[h] for h in range(nhead)], axis=-1)  # (S, D)
    y = jnp.dot(attn.astype(jnp.bfloat16), out_w_ref[...],
                preferred_element_type=jnp.float32) + out_b_ref[...]

    # residual + LayerNorm (post-norm), statistics in f32
    r = x + y
    mean = jnp.mean(r, axis=-1, keepdims=True)
    c = r - mean
    var = jnp.mean(c * c, axis=-1, keepdims=True)
    inv = lax.rsqrt(var + eps)
    o_ref[0] = (c * inv * g_ref[...] + beta_ref[...]).astype(o_ref.dtype)


def attention_block(x, lyr, *, nhead, eps=1e-5):
    """x: (N, S, D) f32 -> LayerNorm(x + MHA(x)) with causal mask."""
    Nb, S, D = x.shape
    scale = 1.0 / math.sqrt(D // nhead)
    return pl.pallas_call(
        functools.partial(_attn_block_kernel, nhead=nhead, scale=scale,
                          eps=float(eps)),
        out_shape=jax.ShapeDtypeStruct((Nb, S, D), jnp.float32),
        grid=(Nb,),
        in_specs=[pl.BlockSpec((1, S, D), lambda b: (b, 0, 0)),
                  pl.BlockSpec((D, 3 * D), lambda b: (0, 0)),
                  pl.BlockSpec((1, 3 * D), lambda b: (0, 0)),
                  pl.BlockSpec((D, D), lambda b: (0, 0)),
                  pl.BlockSpec((1, D), lambda b: (0, 0)),
                  pl.BlockSpec((1, D), lambda b: (0, 0)),
                  pl.BlockSpec((1, D), lambda b: (0, 0))],
        out_specs=pl.BlockSpec((1, S, D), lambda b: (b, 0, 0)),
        compiler_params=pltpu.CompilerParams(
            dimension_semantics=("parallel",)),
    )(x, lyr["in_w"], lyr["in_b"].reshape(1, 3 * D),
      lyr["out_w"], lyr["out_b"].reshape(1, D),
      lyr["g1"].reshape(1, D), lyr["b1"].reshape(1, D))


# ---------------------- fused feed-forward block kernel ----------------------
def _ff_block_kernel(x_ref, w1_ref, b1_ref, w2_ref, b2_ref, g_ref, beta_ref,
                     o_ref, *, eps):
    x = x_ref[...]                                   # (bm, D) f32
    h = jnp.dot(x.astype(jnp.bfloat16), w1_ref[...],
                preferred_element_type=jnp.float32) + b1_ref[...]
    h = jnp.maximum(h, 0.0)
    y = jnp.dot(h.astype(jnp.bfloat16), w2_ref[...],
                preferred_element_type=jnp.float32) + b2_ref[...]
    r = x + y
    mean = jnp.mean(r, axis=-1, keepdims=True)
    c = r - mean
    var = jnp.mean(c * c, axis=-1, keepdims=True)
    inv = lax.rsqrt(var + eps)
    o_ref[...] = (c * inv * g_ref[...] + beta_ref[...]).astype(o_ref.dtype)


def ff_block(x, lyr, eps=1e-5):
    """x: (M, D) f32 -> LayerNorm(x + FF2(relu(FF1(x)))), tiled over rows."""
    M, D = x.shape
    F = lyr["ff1_w"].shape[1]
    bm = _pick_block(M, (512, 256, 128, 64, 32, 16, 8))
    return pl.pallas_call(
        functools.partial(_ff_block_kernel, eps=float(eps)),
        out_shape=jax.ShapeDtypeStruct((M, D), jnp.float32),
        grid=(M // bm,),
        in_specs=[pl.BlockSpec((bm, D), lambda i: (i, 0)),
                  pl.BlockSpec((D, F), lambda i: (0, 0)),
                  pl.BlockSpec((1, F), lambda i: (0, 0)),
                  pl.BlockSpec((F, D), lambda i: (0, 0)),
                  pl.BlockSpec((1, D), lambda i: (0, 0)),
                  pl.BlockSpec((1, D), lambda i: (0, 0)),
                  pl.BlockSpec((1, D), lambda i: (0, 0))],
        out_specs=pl.BlockSpec((bm, D), lambda i: (i, 0)),
        compiler_params=pltpu.CompilerParams(
            dimension_semantics=("parallel",)),
    )(x, lyr["ff1_w"], lyr["ff1_b"].reshape(1, F),
      lyr["ff2_w"], lyr["ff2_b"].reshape(1, D),
      lyr["g2"].reshape(1, D), lyr["b2"].reshape(1, D))


# -------------------------------- parameters ---------------------------------
def init_params(key, input_dim, num_classes, dim_feedforward, nlayers):
    D = ENCODER_NUM

    def dense(k, fan_in, fan_out):
        kw, kb = jax.random.split(k)
        w = (jax.random.normal(kw, (fan_in, fan_out), jnp.float32)
             * 0.02).astype(jnp.bfloat16)            # matmul weights in bf16
        b = jax.random.normal(kb, (fan_out,), jnp.float32) * 0.02
        return w, b

    keys = jax.random.split(key, 2 + nlayers)
    fc_w, fc_b = dense(keys[0], input_dim, D)
    cls_w, cls_b = dense(keys[1], D, num_classes)
    # lane-dense classifier: zero-pad output features up to 128 lanes
    c_pad = ((num_classes + LANE - 1) // LANE) * LANE
    cls_w = jnp.pad(cls_w, ((0, 0), (0, c_pad - num_classes)))
    cls_b = jnp.pad(cls_b, ((0, c_pad - num_classes),))

    layers = []
    for l in range(nlayers):
        k = jax.random.split(keys[2 + l], 4)
        in_w, in_b = dense(k[0], D, 3 * D)           # MHA in_proj (q|k|v)
        out_w, out_b = dense(k[1], D, D)             # MHA out_proj
        ff1_w, ff1_b = dense(k[2], D, dim_feedforward)
        ff2_w, ff2_b = dense(k[3], dim_feedforward, D)
        layers.append(dict(
            in_w=in_w, in_b=in_b, out_w=out_w, out_b=out_b,
            ff1_w=ff1_w, ff1_b=ff1_b, ff2_w=ff2_w, ff2_b=ff2_b,
            g1=jnp.ones((D,), jnp.float32), b1=jnp.zeros((D,), jnp.float32),
            g2=jnp.ones((D,), jnp.float32), b2=jnp.zeros((D,), jnp.float32)))
    return dict(fc_w=fc_w, fc_b=fc_b, cls_w=cls_w, cls_b=cls_b,
                num_classes=num_classes, layers=layers)


# --------------------------------- forward -----------------------------------
def transformer_classifier_forward(src, params, *, nhead):
    # src: (S, N, input_dim) — seq-first, like nn.TransformerEncoder default.
    S, N, input_dim = src.shape
    D = ENCODER_NUM
    C = params["num_classes"]

    # batch-major token layout: one contiguous (S, D) sequence per batch row,
    # so the fused attention kernel grabs a whole sequence per grid step.
    x = jnp.transpose(src, (1, 0, 2)).reshape(N * S, input_dim)

    # src = fc(src); src = src * sqrt(encoder_num)   (scale fused in epilogue)
    x = linear(x, params["fc_w"], params["fc_b"], scale=math.sqrt(D))

    # TODO(synk): dropout layers are train-time only; eval-mode identity here.
    for lyr in params["layers"]:
        x = attention_block(x.reshape(N, S, D), lyr, nhead=nhead).reshape(N * S, D)
        x = ff_block(x, lyr)

    # lane-dense (128-padded) classifier, sliced back to num_classes
    out = linear(x, params["cls_w"], params["cls_b"])[:, :C]
    out = out.reshape(N, S, C).transpose(1, 0, 2)    # back to (S, N, C)
    return jnp.squeeze(out)                          # torch.squeeze


# ----------------------------------- main -------------------------------------
if __name__ == "__main__":
    # small shapes consistent with the module: seq=8, batch=2, input_dim=16,
    # num_classes=4; constructor args nhead=8, nlayers=2, dim_feedforward=256.
    S, N = 8, 2
    input_dim, num_classes = 16, 4
    nhead, nlayers, dim_feedforward = 8, 2, 256

    key = jax.random.PRNGKey(0)
    kx, kp = jax.random.split(key)
    src = jax.random.normal(kx, (S, N, input_dim), jnp.float32)
    params = init_params(kp, input_dim, num_classes, dim_feedforward, nlayers)

    out = transformer_classifier_forward(src, params, nhead=nhead)
    out = jax.block_until_ready(out)

    assert out.shape == (S, N, num_classes), out.shape
    assert bool(jnp.all(jnp.isfinite(out)))
    print("KERNEL_OK")
</pallas_src>

<mosaic_0001>
module attributes {stable_mosaic.version = 11 : i64} {
  func.func @_linear_kernel(%arg0: i32, %arg1: i32, %arg2: memref<16x16xf32, #tpu.memory_space<vmem>>, %arg3: memref<16x512xbf16, #tpu.memory_space<vmem>>, %arg4: memref<1x512xf32, #tpu.memory_space<vmem>>, %arg5: memref<16x512xf32, #tpu.memory_space<vmem>>) attributes {dimension_semantics = [#tpu.dimension_semantics<parallel>, #tpu.dimension_semantics<parallel>], iteration_bounds = array<i64: 1, 2>, scalar_prefetch = 0 : i64, scratch_operands = 0 : i64, tpu.core_type = #tpu.core_type<tc>, window_params = [{transform_indices = @transform_0, window_bounds = array<i64: 16, 16>}, {transform_indices = @transform_1, window_bounds = array<i64: 16, 512>}, {transform_indices = @transform_2, window_bounds = array<i64: 1, 512>}, {transform_indices = @transform_3, window_bounds = array<i64: 16, 512>}]} {
    %c0 = arith.constant 0 : index
    %c0_0 = arith.constant 0 : index
    %0 = vector.load %arg2[%c0, %c0_0] : memref<16x16xf32, #tpu.memory_space<vmem>>, vector<16x16xf32>
    %1 = arith.truncf %0 : vector<16x16xf32> to vector<16x16xbf16>
    %c0_1 = arith.constant 0 : index
    %c0_2 = arith.constant 0 : index
    %2 = vector.load %arg3[%c0_1, %c0_2] : memref<16x512xbf16, #tpu.memory_space<vmem>>, vector<16x512xbf16>
    %cst = arith.constant dense<0.000000e+00> : vector<16x512xf32>
    %3 = tpu.matmul %1, %2, %cst {dimension_numbers = #tpu.dot_dimension_numbers<[1], [0], [0], [1], [0, 0, 1, 1], [], []>} : vector<16x16xbf16>, vector<16x512xbf16>, vector<16x512xf32> -> vector<16x512xf32>
    %c0_3 = arith.constant 0 : index
    %c0_4 = arith.constant 0 : index
    %4 = vector.load %arg4[%c0_3, %c0_4] : memref<1x512xf32, #tpu.memory_space<vmem>>, vector<1x512xf32>
    %5 = vector.broadcast %4 : vector<1x512xf32> to vector<16x512xf32>
    %6 = arith.addf %3, %5 : vector<16x512xf32>
    %cst_5 = arith.constant 3.200000e+01 : f32
    %7 = vector.broadcast %cst_5 : f32 to vector<16x512xf32>
    %8 = arith.mulf %6, %7 : vector<16x512xf32>
    %c0_6 = arith.constant 0 : index
    %c0_7 = arith.constant 0 : index
    %9 = vector.load %arg5[%c0_6, %c0_7] : memref<16x512xf32, #tpu.memory_space<vmem>>, vector<16x512xf32>
    tpu.vector_store %arg5[%c0_6, %c0_7], %8 {strides = array<i32>} : memref<16x512xf32, #tpu.memory_space<vmem>>, vector<16x512xf32>,
    return
  }
  func.func @transform_0(%arg0: i32, %arg1: i32) -> (i32, i32) {
    %c0_i32 = arith.constant 0 : i32
    %c0_i32_0 = arith.constant 0 : i32
    return %arg0, %c0_i32 : i32, i32
  }
  func.func @transform_1(%arg0: i32, %arg1: i32) -> (i32, i32) {
    %c0_i32 = arith.constant 0 : i32
    %c0_i32_0 = arith.constant 0 : i32
    return %c0_i32, %arg1 : i32, i32
  }
  func.func @transform_2(%arg0: i32, %arg1: i32) -> (i32, i32) {
    %c0_i32 = arith.constant 0 : i32
    %c0_i32_0 = arith.constant 0 : i32
    return %c0_i32, %arg1 : i32, i32
  }
  func.func @transform_3(%arg0: i32, %arg1: i32) -> (i32, i32) {
    %c0_i32 = arith.constant 0 : i32
    return %arg0, %arg1 : i32, i32
  }
}

</mosaic_0001>

<llo_original>
// kernel: tpu_custom_call.1
$region0: #{tpu_custom_call.1}
  #allocation0 [shape = 'u32[]', space=smem, size = 0x4, offset = 0x4, fixed_abs, tag = 'smem constant byte address 0x4 - core index']
  #allocation1 [shape = 'u32[144,128]{1,0:T(1,128)}', space=vmem, size = 0x12000, scoped, tag = 'internal scratch']
  %s0 = inlined_call_operand.hbm [shape: f32[16,16], index: 0, kind: input, shape index: {}]
  %s1 = inlined_call_operand.hbm [shape: bf16[16,1024], index: 1, kind: input, shape index: {}]
  %s2 = inlined_call_operand.hbm [shape: f32[1,1024], index: 2, kind: input, shape index: {}]
  %s3 = inlined_call_operand.hbm [shape: f32[16,1024], index: 3, kind: output, shape index: {}]
  %s4 = sld [smem:[#allocation0]]
  $region57: #{tpu_custom_call.1} parent=0
    _
  %s6 = ssub.s32 1, %s4
  %s7 = scalar_select 0, %s6, %s4
  $region1: #{tpu_custom_call.1} parent=0
    #allocation2 [shape = 'u8[8192]{0}', space=vmem, size = 0x2000, scoped, tag = 'input window, operand 0, single buffered']
    #allocation3 [shape = 's32[2]{0}', space=sflag, size = 0x8, scoped, tag = 'scoped memory for tpu_custom_call.1']
    #allocation4 [shape = 's32[2]{0}', space=sflag, size = 0x8, scoped, tag = 'scoped memory for tpu_custom_call.1']
    #allocation5 [shape = 'u8[32768]{0}', space=vmem, size = 0x8000, scoped, tag = 'input window, operand 1']
    #allocation6 [shape = 's32[2]{0}', space=sflag, size = 0x8, scoped, tag = 'scoped memory for tpu_custom_call.1']
    #allocation7 [shape = 'u8[4096]{0}', space=vmem, size = 0x1000, scoped, tag = 'input window, operand 2']
    #allocation8 [shape = 'u8[65536]{0}', space=vmem, size = 0x10000, scoped, tag = 'output window, operand 0']
    %8 = vsyncpa [#allocation3], 0
    %9 = vsyncpa [#allocation6], 0
    %s10 = scalar_lea.sflag [#allocation6], 1
    %11 = vsyncpa %s10, 0
    %12 = vsyncpa [#allocation4], 0
    %s13 = scalar_lea.sflag [#allocation4], 1
    %14 = vsyncpa %s13, 0
    loop: start=0, step=1, limit=4
    $region2: #{tpu_custom_call.1} parent=1 // loop_pre_header
      _
    $region3: #{tpu_custom_call.1} parent=1 // loop_header
      %s16 = sphi 0, %s20
      %p17 = scmp.ge.s32.totalorder %s16, 4
      %s23 = sphi 0, %s35
      %s24 = sphi 0, %s31
      %s25 = sphi 0, %s23
      %s26 = sphi 0, %s24
      %s27 = sphi 0, %s25
      %s28 = sphi 0, %s26
      %s38 = sphi 0, %s40
      %s41 = sphi 0, %s38
      %s42 = sphi 0, %s41
      %s58 = sphi 0, %s42
      %s64 = sphi 0, %s66
      %s67 = sphi 0, %s64
      %s68 = sphi 0, %s67
      %s84 = sphi 0, %s68
      %s90 = sphi 0, %s92
      %s93 = sphi 0, %s90
      %s94 = sphi 0, %s93
      %s110 = sphi 0, %s94
      %s118 = sphi 0, %s120
      %s121 = sphi 0, %s118
      %s122 = sphi 0, %s121
      %s138 = sphi 0, %s122
    $region4: #{tpu_custom_call.1} parent=1 // loop_header_branch
      %19 = sbr.rel (%p17) target = $region8
    $region5: #{tpu_custom_call.1} parent=1 // loop_body
      %s21 = ssub.s32 %s16, 1
      %s22 = ssub.s32 %s16, 2
      %s29 = sadd.s32 1, %s24
      %p30 = scmp.ge.s32.totalorder %s29, 2
      %s31 = scalar_select %p30, 0, %s29
      %s32 = sadd.s32 1, %s23
      %s33 = scalar_select %p30, %s32, %s23
      %p34 = scmp.ge.s32.totalorder %s33, 1
      %s35 = scalar_select %p34, 0, %s33
      %s36 = ssub.s32 %s23, %s35
      %p37 = scmp.eq.s32.totalorder %s36, 0
      %s39 = sadd.s32 %s38, 1
      %s40 = scalar_select %p37, %s38, %s39
      %p43 = pneg %p37
      %p44 = scmp.eq.s32.totalorder %s16, 1
      %p45 = por %p43, %p44
      %p46 = scmp.ne.s32.totalorder %s38, %s41
      %p47 = scmp.eq.s32.totalorder %s16, 0
      %p48 = por %p46, %p47
      %p49 = scmp.ne.s32.totalorder %s38, %s41
      %p50 = scmp.eq.s32.totalorder %s21, 1
      %p51 = por %p49, %p50
      %p52 = scmp.ne.s32.totalorder %s41, %s42
      %p53 = scmp.eq.s32.totalorder %s21, 0
      %p54 = por %p52, %p53
      %p55 = scmp.ne.s32.totalorder %s41, %s42
      %p56 = scmp.eq.s32.totalorder %s22, 1
      %p57 = por %p55, %p56
      %p59 = scmp.ne.s32.totalorder %s42, %s58
      %p60 = scmp.eq.s32.totalorder %s22, 0
      %p61 = por %p59, %p60
      %s62 = ssub.s32 %s24, %s31
      %p63 = scmp.eq.s32.totalorder %s62, 0
      %s65 = sadd.s32 %s64, 1
      %s66 = scalar_select %p63, %s64, %s65
      %p69 = pneg %p63
      %p70 = scmp.eq.s32.totalorder %s16, 1
      %p71 = por %p69, %p70
      %p72 = scmp.ne.s32.totalorder %s64, %s67
      %p73 = scmp.eq.s32.totalorder %s16, 0
      %p74 = por %p72, %p73
      %p75 = scmp.ne.s32.totalorder %s64, %s67
      %p76 = scmp.eq.s32.totalorder %s21, 1
      %p77 = por %p75, %p76
      %p78 = scmp.ne.s32.totalorder %s67, %s68
      %p79 = scmp.eq.s32.totalorder %s21, 0
      %p80 = por %p78, %p79
      %p81 = scmp.ne.s32.totalorder %s67, %s68
      %p82 = scmp.eq.s32.totalorder %s22, 1
      %p83 = por %p81, %p82
      %p85 = scmp.ne.s32.totalorder %s68, %s84
      %p86 = scmp.eq.s32.totalorder %s22, 0
      %p87 = por %p85, %p86
      %s88 = ssub.s32 %s24, %s31
      %p89 = scmp.eq.s32.totalorder %s88, 0
      %s91 = sadd.s32 %s90, 1
      %s92 = scalar_select %p89, %s90, %s91
      %p95 = pneg %p89
      %p96 = scmp.eq.s32.totalorder %s16, 1
      %p97 = por %p95, %p96
      %p98 = scmp.ne.s32.totalorder %s90, %s93
      %p99 = scmp.eq.s32.totalorder %s16, 0
      %p100 = por %p98, %p99
      %p101 = scmp.ne.s32.totalorder %s90, %s93
      %p102 = scmp.eq.s32.totalorder %s21, 1
      %p103 = por %p101, %p102
      %p104 = scmp.ne.s32.totalorder %s93, %s94
      %p105 = scmp.eq.s32.totalorder %s21, 0
      %p106 = por %p104, %p105
      %p107 = scmp.ne.s32.totalorder %s93, %s94
      %p108 = scmp.eq.s32.totalorder %s22, 1
      %p109 = por %p107, %p108
      %p111 = scmp.ne.s32.totalorder %s94, %s110
      %p112 = scmp.eq.s32.totalorder %s22, 0
      %p113 = por %p111, %p112
      %s114 = ssub.s32 %s23, %s35
      %s115 = ssub.s32 %s24, %s31
      %s116 = sor.u32 %s114, %s115
      %p117 = scmp.eq.s32.totalorder %s116, 0
      %s119 = sadd.s32 %s118, 1
      %s120 = scalar_select %p117, %s118, %s119
      %p123 = pneg %p117
      %p124 = scmp.eq.s32.totalorder %s16, 1
      %p125 = por %p123, %p124
      %p126 = scmp.ne.s32.totalorder %s118, %s121
      %p127 = scmp.eq.s32.totalorder %s16, 0
      %p128 = por %p126, %p127
      %p129 = scmp.ne.s32.totalorder %s118, %s121
      %p130 = scmp.eq.s32.totalorder %s21, 1
      %p131 = por %p129, %p130
      %p132 = scmp.ne.s32.totalorder %s121, %s122
      %p133 = scmp.eq.s32.totalorder %s21, 0
      %p134 = por %p132, %p133
      %p135 = scmp.ne.s32.totalorder %s121, %s122
      %p136 = scmp.eq.s32.totalorder %s22, 1
      %p137 = por %p135, %p136
      %p139 = scmp.ne.s32.totalorder %s122, %s138
      %p140 = scmp.eq.s32.totalorder %s22, 0
      %p141 = por %p139, %p140
      %p142 = scmp.le.s32.totalorder 1, %s16
      %p143 = scmp.lt.s32.totalorder %s16, 3
      %p144 = pnand %p142, %p143
      %p145 = pneg %p144
      // Predicated region
      $region9: #{tpu_custom_call.1} parent=5 // pred_check
        _
      $region10: #{tpu_custom_call.1} parent=5 // pred_check_branch
        %147 = sbr.rel (%p144) target = $region12
      $region11: #{tpu_custom_call.1} parent=5 // pred_region
        %s148 = ssub.s32 %s16, 1
        // Predicated region
        $region13: #{tpu_custom_call.1} parent=11 // pred_check
          %p149 = pneg %p54
        $region14: #{tpu_custom_call.1} parent=11 // pred_check_branch
          %151 = sbr.rel (%p149) target = $region16
        $region15: #{tpu_custom_call.1} parent=11 // pred_region
          %s152 = smul.u32 2, %s25
          %s154 = ssub.s32 256, 256
          %155 = vsyncadd [#allocation3], %s154
          %s156 = smul.addr %s152, 128
          %s157 = scalar_lea.hbm %s0, %s156
          %s158 = sshll.u32 [#allocation2], 4
          %s159 = int_to_ptr.vmem [resolvable:$true] %s158
          %164 = dma.hbm_to_vmem [thread:$0]  %s157, 256, %s159, [#allocation3], 128, 128, 8
        $region16: #{tpu_custom_call.1} parent=11 // pred_fallthru
          _
      $region12: #{tpu_custom_call.1} parent=5 // pred_fallthru
        _
      %p165 = scmp.lt.s32.totalorder %s16, 2
      // Predicated region
      $region17: #{tpu_custom_call.1} parent=5 // pred_check
        %p166 = pneg %p165
      $region18: #{tpu_custom_call.1} parent=5 // pred_check_branch
        %168 = sbr.rel (%p166) target = $region20
      $region19: #{tpu_custom_call.1} parent=5 // pred_region
        // Predicated region
        $region21: #{tpu_custom_call.1} parent=19 // pred_check
          %p169 = pneg %p74
        $region22: #{tpu_custom_call.1} parent=19 // pred_check_branch
          %171 = sbr.rel (%p169) target = $region24
        $region23: #{tpu_custom_call.1} parent=19 // pred_region
          %s172 = sand.u32 %s16, 1
          %s173 = scalar_lea.sflag [#allocation6], %s172
          %s174 = sand.u32 %s64, 1
          %s175 = smul.addr %s174, 32
          %s176 = scalar_lea.vmem [#allocation5], %s175
          %s177 = smul.u32 4, %s24
          %s179 = ssub.s32 512, 512
          %180 = vsyncadd %s173, %s179
          %s181 = smul.addr %s177, 64
          %s182 = scalar_lea.hbm %s1, %s181
          %s183 = sshll.u32 %s176, 4
          %s184 = int_to_ptr.vmem [resolvable:$true] %s183
          %189 = dma.hbm_to_vmem [thread:$0]  %s182, 512, %s184, %s173, 512, 256, 16
        $region24: #{tpu_custom_call.1} parent=19 // pred_fallthru
          _
        // Predicated region
        $region25: #{tpu_custom_call.1} parent=19 // pred_check
          %p190 = pneg %p100
        $region26: #{tpu_custom_call.1} parent=19 // pred_check_branch
          %192 = sbr.rel (%p190) target = $region28
        $region27: #{tpu_custom_call.1} parent=19 // pred_region
          %s193 = sand.u32 %s16, 1
          %s194 = scalar_lea.sflag [#allocation6], %s193
          %s195 = sand.u32 %s90, 1
          %s196 = smul.addr %s195, 4
          %s197 = scalar_lea.vmem [#allocation7], %s196
          %s198 = smul.u32 4, %s24
          %s200 = ssub.s32 64, 64
          %201 = vsyncadd %s194, %s200
          %s202 = smul.addr %s198, 16
          %s203 = scalar_lea.hbm %s2, %s202
          %s205 = sshll.u32 %s197, 4
          %s206 = int_to_ptr.vmem [resolvable:$true] %s205
          %208 = dma.hbm_to_vmem [thread:$0]  %s203, 64, %s206, %s194
        $region28: #{tpu_custom_call.1} parent=19 // pred_fallthru
          _
      $region20: #{tpu_custom_call.1} parent=5 // pred_fallthru
        _
      %p209 = scmp.le.s32.totalorder 1, %s16
      %p210 = scmp.lt.s32.totalorder %s16, 3
      %p211 = pnand %p209, %p210
      %p212 = pneg %p211
      // Predicated region
      $region29: #{tpu_custom_call.1} parent=5 // pred_check
        _
      $region30: #{tpu_custom_call.1} parent=5 // pred_check_branch
        %214 = sbr.rel (%p211) target = $region32
      $region31: #{tpu_custom_call.1} parent=5 // pred_region
        %s215 = ssub.s32 %s16, 1
        // Predicated region
        $region33: #{tpu_custom_call.1} parent=31 // pred_check
          %p216 = pneg %p54
        $region34: #{tpu_custom_call.1} parent=31 // pred_check_branch
          %218 = sbr.rel (%p216) target = $region36
        $region35: #{tpu_custom_call.1} parent=31 // pred_region
          %219 = dma.done [#allocation3], 256
        $region36: #{tpu_custom_call.1} parent=31 // pred_fallthru
          _
        %s220 = sand.u32 %s21, 1
        %s221 = scalar_lea.sflag [#allocation6], %s220
        %s222 = sand.u32 %s67, 1
        %s223 = smul.addr %s222, 32
        %s224 = scalar_lea.vmem [#allocation5], %s223
        // Predicated region
        $region37: #{tpu_custom_call.1} parent=31 // pred_check
          %p225 = pneg %p80
        $region38: #{tpu_custom_call.1} parent=31 // pred_check_branch
          %227 = sbr.rel (%p225) target = $region40
        $region39: #{tpu_custom_call.1} parent=31 // pred_region
          %228 = dma.done %s221, 512
        $region40: #{tpu_custom_call.1} parent=31 // pred_fallthru
          _
        %s229 = sand.u32 %s21, 1
        %s230 = scalar_lea.sflag [#allocation6], %s229
        %s231 = sand.u32 %s93, 1
        %s232 = smul.addr %s231, 4
        %s233 = scalar_lea.vmem [#allocation7], %s232
        // Predicated region
        $region41: #{tpu_custom_call.1} parent=31 // pred_check
          %p234 = pneg %p106
        $region42: #{tpu_custom_call.1} parent=31 // pred_check_branch
          %236 = sbr.rel (%p234) target = $region44
        $region43: #{tpu_custom_call.1} parent=31 // pred_region
          %237 = dma.done %s230, 64
        $region44: #{tpu_custom_call.1} parent=31 // pred_fallthru
          _
        %p238 = pneg %p54
        %p239 = pneg %p51
        %s240 = sand.u32 %s21, 1
        %s241 = scalar_lea.sflag [#allocation6], %s240
        %s242 = sand.u32 %s67, 1
        %s243 = smul.addr %s242, 32
        %s244 = scalar_lea.vmem [#allocation5], %s243
        %p245 = pneg %p80
        %p246 = pneg %p77
        %s247 = sand.u32 %s21, 1
        %s248 = scalar_lea.sflag [#allocation6], %s247
        %s249 = sand.u32 %s93, 1
        %s250 = smul.addr %s249, 4
        %s251 = scalar_lea.vmem [#allocation7], %s250
        %p252 = pneg %p106
        %p253 = pneg %p103
        %p254 = pneg %p134
        %p255 = pneg %p131
        %s256 = sand.u32 %s121, 1
        %s257 = scalar_lea.sflag [#allocation4], %s256
        %s258 = sand.u32 %s121, 1
        %s259 = smul.addr %s258, 64
        %s260 = scalar_lea.vmem [#allocation8], %s259
        %s261 = smul.u32 2, %s25
        %s262 = smul.u32 4, %s26
        %s263 = smul.u32 4, %s26
        %s264 = smul.u32 2, %s25
        %s265 = smul.u32 4, %s26
        %v267 = vld [vmem:[#allocation2] sm:$0xff]
        %v268 = vld [vmem:[#allocation2 + $0x8] sm:$0xff]
        %v269 = vpack.c.bf16 %v268, %v267
        %v270 = vld [vmem:[%s224] sm:$0xff]
        %v271 = vld [vmem:[%s224 + $0x8] sm:$0xff]
        %v272 = vld [vmem:[%s224 + $0x10] sm:$0xff]
        %v273 = vld [vmem:[%s224 + $0x18] sm:$0xff]
        %v274 = vld [vmem:[%s233] sm:$0xf]
        %v276 = vlaneseq
        %v277 = vshrl.u32 %v276, 7
        %v278 = vsub.s32 0, %v277
        %v279 = vrot.slane %v274, %v278
        %v280 = vlaneseq
        %v281 = vshrl.u32 %v280, 7
        %v282 = vsub.s32 1, %v281
        %v283 = vrot.slane %v274, %v282
        %v284 = vlaneseq
        %v285 = vshrl.u32 %v284, 7
        %v286 = vsub.s32 2, %v285
        %v287 = vrot.slane %v274, %v286
        %v288 = vlaneseq
        %v289 = vshrl.u32 %v288, 7
        %v290 = vsub.s32 3, %v289
        %v291 = vrot.slane %v274, %v290
        %v300 = vunpack.c.l.b16 %v270
        %v301 = vunpack.c.h.b16 %v270
        %v302 = vunpack.c.l.b16 %v271
        %v303 = vunpack.c.h.b16 %v271
        %v304 = vunpack.c.l.b16 %v272
        %v305 = vunpack.c.h.b16 %v272
        %v306 = vunpack.c.l.b16 %v273
        %v307 = vunpack.c.h.b16 %v273
        %v308 = vpack.c.b16 %v304, %v300
        %v309 = vpack.c.b16 %v305, %v301
        %v310 = vpack.c.b16 %v306, %v302
        %v311 = vpack.c.b16 %v307, %v303
        %vm316 = vcmask 130048
        %v318 = vsel %vm316, %v269, 0
        %320 = vmatprep.subr.bf16.mxu0 %v309
        %321 = vmatpush1.bf16.msra.mxu0 %v308
        %322 = vmatprep.subr.bf16.mxu0 0
        %323 = vmatpush1.bf16.msra.mxu0 0
        %324 = vmatprep.subr.bf16.mxu0 0
        %325 = vmatpush1.bf16.msra.mxu0 0
        %326 = vmatprep.subr.bf16.mxu0 0
        %327 = vmatpush1.bf16.msra.mxu0 0
        %328 = vmatprep.subr.bf16.mxu0 0
        %329 = vmatpush1.bf16.msra.mxu0 0
        %330 = vmatprep.subr.bf16.mxu0 0
        %331 = vmatpush1.bf16.msra.mxu0 0
        %332 = vmatprep.subr.bf16.mxu0 0
        %333 = vmatpush1.bf16.msra.mxu0 0
        %334 = vmatprep.subr.bf16.mxu0 0
        %335 = vmatpush1.bf16.msra.mxu0 0
        %336 = vmatprep.subr.bf16.mxu0 0
        %337 = vmatpush1.bf16.msra.mxu0 0
        %338 = vmatprep.subr.bf16.mxu0 0
        %339 = vmatpush1.bf16.msra.mxu0 0
        %340 = vmatprep.subr.bf16.mxu0 0
        %341 = vmatpush1.bf16.msra.mxu0 0
        %342 = vmatprep.subr.bf16.mxu0 0
        %343 = vmatpush1.bf16.msra.mxu0 0
        %344 = vmatprep.subr.bf16.mxu0 0
        %345 = vmatpush1.bf16.msra.mxu0 0
        %346 = vmatprep.subr.bf16.mxu0 0
        %347 = vmatpush1.bf16.msra.mxu0 0
        %348 = vmatprep.subr.bf16.mxu0 0
        %349 = vmatpush1.bf16.msra.mxu0 0
        %350 = vmatprep.subr.bf16.mxu0 0
        %351 = vmatpush1.bf16.msra.mxu0 0
        %352 = vmatprep.mubr.bf16.mxu0 0
        %353 = vmatmul.mubr.bf16.gmra.mrb[0].mxu0 %v318
        %v354 = vpop.f32.mrb[0].mxu0
        %v355 = vadd.f32 %v279, %v354
        %v356 = vpop.f32.mrb[0].mxu0
        %v357 = vadd.f32 %v283, %v356
        %v358 = vpop.f32.mrb[0].mxu0
        %v359 = vadd.f32 %v279, %v358
        %v360 = vpop.f32.mrb[0].mxu0
        %v361 = vadd.f32 %v283, %v360
        %362 = vdwg.mxu0
        %363 = vmatprep.subr.bf16.mxu0 %v311
        %364 = vmatpush1.bf16.msra.mxu0 %v310
        %365 = vmatprep.subr.bf16.mxu0 0
        %366 = vmatpush1.bf16.msra.mxu0 0
        %367 = vmatprep.subr.bf16.mxu0 0
        %368 = vmatpush1.bf16.msra.mxu0 0
        %369 = vmatprep.subr.bf16.mxu0 0
        %370 = vmatpush1.bf16.msra.mxu0 0
        %371 = vmatprep.subr.bf16.mxu0 0
        %372 = vmatpush1.bf16.msra.mxu0 0
        %373 = vmatprep.subr.bf16.mxu0 0
        %374 = vmatpush1.bf16.msra.mxu0 0
        %375 = vmatprep.subr.bf16.mxu0 0
        %376 = vmatpush1.bf16.msra.mxu0 0
        %377 = vmatprep.subr.bf16.mxu0 0
        %378 = vmatpush1.bf16.msra.mxu0 0
        %379 = vmatprep.subr.bf16.mxu0 0
        %380 = vmatpush1.bf16.msra.mxu0 0
        %381 = vmatprep.subr.bf16.mxu0 0
        %382 = vmatpush1.bf16.msra.mxu0 0
        %383 = vmatprep.subr.bf16.mxu0 0
        %384 = vmatpush1.bf16.msra.mxu0 0
        %385 = vmatprep.subr.bf16.mxu0 0
        %386 = vmatpush1.bf16.msra.mxu0 0
        %387 = vmatprep.subr.bf16.mxu0 0
        %388 = vmatpush1.bf16.msra.mxu0 0
        %389 = vmatprep.subr.bf16.mxu0 0
        %390 = vmatpush1.bf16.msra.mxu0 0
        %391 = vmatprep.subr.bf16.mxu0 0
        %392 = vmatpush1.bf16.msra.mxu0 0
        %393 = vmatprep.subr.bf16.mxu0 0
        %394 = vmatpush1.bf16.msra.mxu0 0
        %395 = vmatprep.mubr.bf16.mxu0 0
        %396 = vmatmul.mubr.bf16.gmra.mrb[0].mxu0 %v318
        %v397 = vpop.f32.mrb[0].mxu0
        %v398 = vadd.f32 %v287, %v397
        %v399 = vpop.f32.mrb[0].mxu0
        %v400 = vadd.f32 %v291, %v399
        %v401 = vpop.f32.mrb[0].mxu0
        %v402 = vadd.f32 %v287, %v401
        %v403 = vpop.f32.mrb[0].mxu0
        %v404 = vadd.f32 %v291, %v403
        %405 = vdwg.mxu0
        %v406 = vmul.f32 %v355, 32.0
        %v407 = vmul.f32 %v357, 32.0
        %v408 = vmul.f32 %v398, 32.0
        %v409 = vmul.f32 %v400, 32.0
        %v410 = vmul.f32 %v359, 32.0
        %v411 = vmul.f32 %v361, 32.0
        %v412 = vmul.f32 %v402, 32.0
        %v413 = vmul.f32 %v404, 32.0
        %414 = vst [vmem:[%s260] sm:$0xff] %v406
        %415 = vst [vmem:[%s260 + $0x8] sm:$0xff] %v407
        %416 = vst [vmem:[%s260 + $0x10] sm:$0xff] %v408
        %417 = vst [vmem:[%s260 + $0x18] sm:$0xff] %v409
        %418 = vst [vmem:[%s260 + $0x20] sm:$0xff] %v410
        %419 = vst [vmem:[%s260 + $0x28] sm:$0xff] %v411
        %420 = vst [vmem:[%s260 + $0x30] sm:$0xff] %v412
        %421 = vst [vmem:[%s260 + $0x38] sm:$0xff] %v413
        %s422 = sand.u32 %s121, 1
        %s423 = scalar_lea.sflag [#allocation4], %s422
        %s424 = sand.u32 %s121, 1
        %s425 = smul.addr %s424, 64
        %s426 = scalar_lea.vmem [#allocation8], %s425
        // Predicated region
        $region45: #{tpu_custom_call.1} parent=31 // pred_check
          %p427 = pneg %p131
        $region46: #{tpu_custom_call.1} parent=31 // pred_check_branch
          %429 = sbr.rel (%p427) target = $region48
        $region47: #{tpu_custom_call.1} parent=31 // pred_region
          %s430 = smul.u32 2, %s25
          %s431 = smul.u32 4, %s26
          %s433 = ssub.s32 1024, 1024
          %434 = vsyncadd %s423, %s433
          %s435 = smul.addr %s430, 8
          %s436 = sadd.s32 %s431, %s435
          %s437 = smul.addr %s436, 128
          %s438 = scalar_lea.hbm %s3, %s437
          %s439 = sshll.u32 %s426, 4
          %s440 = int_to_ptr.vmem [resolvable:$true] %s439
          %445 = dma.vmem_to_hbm [thread:$0]  %s440, 1024, %s438, %s423, 512, 1024, 32
        $region48: #{tpu_custom_call.1} parent=31 // pred_fallthru
          _
      $region32: #{tpu_custom_call.1} parent=5 // pred_fallthru
        _
      %p446 = scmp.le.s32.totalorder 2, %s16
      // Predicated region
      $region49: #{tpu_custom_call.1} parent=5 // pred_check
        %p447 = pneg %p446
      $region50: #{tpu_custom_call.1} parent=5 // pred_check_branch
        %449 = sbr.rel (%p447) target = $region52
      $region51: #{tpu_custom_call.1} parent=5 // pred_region
        %s450 = ssub.s32 %s16, 2
        // Predicated region
        $region53: #{tpu_custom_call.1} parent=51 // pred_check
          %p451 = pneg %p137
        $region54: #{tpu_custom_call.1} parent=51 // pred_check_branch
          %453 = sbr.rel (%p451) target = $region56
        $region55: #{tpu_custom_call.1} parent=51 // pred_region
          %s454 = sand.u32 %s122, 1
          %s455 = scalar_lea.sflag [#allocation4], %s454
          %s456 = sand.u32 %s122, 1
          %s457 = smul.addr %s456, 64
          %s458 = scalar_lea.vmem [#allocation8], %s457
          %459 = dma.done %s455, 1024
        $region56: #{tpu_custom_call.1} parent=51 // pred_fallthru
          _
      $region52: #{tpu_custom_call.1} parent=5 // pred_fallthru
        _
    $region6: #{tpu_custom_call.1} parent=1 // loop_footer
      %s20 = sadd.s32 1, %s16
    $region7: #{tpu_custom_call.1} parent=1 // loop_footer_branch
      %15 = sbr.rel target = $region3
    $region8: #{tpu_custom_call.1} parent=1 // loop_exit
      _
    %460 = vsyncpa [#allocation3], 1
    %s461 = scalar_lea.sflag [#allocation3], 1
    %462 = vsyncpa %s461, 1
    %463 = vsyncpa [#allocation6], 1
    %s464 = scalar_lea.sflag [#allocation6], 1
    %465 = vsyncpa %s464, 1
    %466 = vsyncpa [#allocation4], 1
    %s467 = scalar_lea.sflag [#allocation4], 1
    %468 = vsyncpa %s467, 1

</llo_original>
